<compile_context>
chip_gen: v5e
topology: v5e:2x2
jax: 0.10.0
libtpu: 0.0.40
codegen_flags: <defaults>
</compile_context>

<pallas_src>
import jax
import jax.numpy as jnp
from jax.experimental import pallas as pl
from jax.experimental.pallas import tpu as pltpu

_LANE = 128


def _round_up(n: int, m: int) -> int:
    return (n + m - 1) // m * m


def quantum_block_kernel(c0_ref, s0_ref, c1_ref, s1_ref,
                         x0_ref, x1_ref, o0_ref, o1_ref):
    """One rotation block over a lane-dense batch of circuits.

    c*/s* refs: (3, 1) precomputed cos/sin of block_weights[:, wire]
                (transcendentals hoisted out of the kernel; loop-invariant).
    x*/o* refs: (3, blk) wire-* amplitudes, batch on the lane axis.

    Pure VPU work: 4 muls + 2 add/sub per output pair, no cross-lane
    movement, unmasked lane-dense stores.
    """
    x0 = x0_ref[...]
    x1 = x1_ref[...]
    o0_ref[...] = c0_ref[...] * x0 - s0_ref[...] * x1
    o1_ref[...] = c1_ref[...] * x1 + s1_ref[...] * x0


def quantum_block_batched(block_weights, x0, x1, *, block_lanes=2048):
    """Applies the rotation block to a batch of circuits.

    Args:
      block_weights: (3, 2) float32 rotation angles (rows = rotation index,
        cols = wire index), matching the PyTorch parameter layout.
      x0, x1: (3, B) wire-0 / wire-1 inputs, batch on the last (lane) axis.
      block_lanes: lane width per grid block (multiple of 128).

    Returns:
      (o0, o1): (3, B) wire-0 / wire-1 outputs.
    """
    assert block_weights.shape == (3, 2)
    assert x0.shape == x1.shape and x0.ndim == 2 and x0.shape[0] == 3
    assert block_lanes % _LANE == 0
    B = x0.shape[1]
    dtype = x0.dtype

    # Hoist the 6 transcendentals out of the kernel (loop-invariant; keeps
    # the kernel EUP-free).
    c = jnp.cos(block_weights).astype(dtype)
    s = jnp.sin(block_weights).astype(dtype)
    c0, c1 = c[:, 0:1], c[:, 1:2]
    s0, s1 = s[:, 0:1], s[:, 1:2]

    # Pad the batch to a lane-dense (multiple-of-128) width.
    b_pad = max(_round_up(B, _LANE), _LANE)
    if b_pad != B:
        pad = ((0, 0), (0, b_pad - B))
        x0 = jnp.pad(x0, pad)
        x1 = jnp.pad(x1, pad)

    vmem = pltpu.MemorySpace.VMEM

    if b_pad <= block_lanes:
        # Single block: grid-free call, whole arrays resident in VMEM.
        o0, o1 = pl.pallas_call(
            quantum_block_kernel,
            out_shape=(jax.ShapeDtypeStruct((3, b_pad), dtype),
                       jax.ShapeDtypeStruct((3, b_pad), dtype)),
            in_specs=[pl.BlockSpec(memory_space=vmem)] * 6,
            out_specs=(pl.BlockSpec(memory_space=vmem),
                       pl.BlockSpec(memory_space=vmem)),
        )(c0, s0, c1, s1, x0, x1)
    else:
        # 1-D grid over lane blocks; "parallel" lets v7x's 2 TensorCores
        # split the batch (no-op on single-TC v5e/v6e).
        b_grid = _round_up(b_pad, block_lanes)
        if b_grid != b_pad:
            pad = ((0, 0), (0, b_grid - b_pad))
            x0 = jnp.pad(x0, pad)
            x1 = jnp.pad(x1, pad)
        const_spec = pl.BlockSpec((3, 1), lambda i: (0, 0))
        wire_spec = pl.BlockSpec((3, block_lanes), lambda i: (0, i))
        o0, o1 = pl.pallas_call(
            quantum_block_kernel,
            out_shape=(jax.ShapeDtypeStruct((3, b_grid), dtype),
                       jax.ShapeDtypeStruct((3, b_grid), dtype)),
            grid=(b_grid // block_lanes,),
            in_specs=[const_spec] * 4 + [wire_spec] * 2,
            out_specs=(wire_spec, wire_spec),
            compiler_params=pltpu.CompilerParams(
                dimension_semantics=("parallel",)),
        )(c0, s0, c1, s1, x0, x1)

    return o0[:, :B], o1[:, :B]


def quantum_circuit_forward(block_weights, inputs):
    """Mirrors QuantumCircuit.forward for a single (3, 2) input.

    Returns the (3, 2) block output (see TODO at top about the reference
    module's invalid reshape).
    """
    assert block_weights.shape == (3, 2)
    assert inputs.shape == (3, 2)
    x0 = inputs[:, 0:1]   # (3, 1) wire 0
    x1 = inputs[:, 1:2]   # (3, 1) wire 1
    o0, o1 = quantum_block_batched(block_weights, x0, x1)
    return jnp.concatenate([o0, o1], axis=1)   # (3, 2)


if __name__ == "__main__":
    key = jax.random.PRNGKey(0)
    kw, kx, kb = jax.random.split(key, 3)

    # Deterministic stand-in for nn.Parameter(torch.randn(3, 2)).
    block_weights = jax.random.normal(kw, (3, 2), dtype=jnp.float32)
    inputs = jax.random.normal(kx, (3, 2), dtype=jnp.float32)

    # --- Module-faithful single-circuit evaluation (grid-free path). ---
    out = quantum_circuit_forward(block_weights, inputs)
    out = jax.block_until_ready(out)

    c = jnp.cos(block_weights)
    s = jnp.sin(block_weights)
    ref = jnp.stack(
        [c[:, 0] * inputs[:, 0] - s[:, 0] * inputs[:, 1],
         c[:, 1] * inputs[:, 1] + s[:, 1] * inputs[:, 0]],
        axis=1,
    )
    assert out.shape == (3, 2) and out.dtype == jnp.float32
    assert jnp.allclose(out, ref, atol=1e-5, rtol=1e-5)

    # --- Small batched, lane-dense check (exercises the grid'd path). ---
    B = 384
    xb = jax.random.normal(kb, (2, 3, B), dtype=jnp.float32)
    x0b, x1b = xb[0], xb[1]
    o0b, o1b = quantum_block_batched(block_weights, x0b, x1b, block_lanes=128)
    o0b = jax.block_until_ready(o0b)
    o1b = jax.block_until_ready(o1b)

    ref0 = c[:, 0:1] * x0b - s[:, 0:1] * x1b
    ref1 = c[:, 1:2] * x1b + s[:, 1:2] * x0b
    assert o0b.shape == (3, B) and o1b.shape == (3, B)
    assert jnp.allclose(o0b, ref0, atol=1e-5, rtol=1e-5)
    assert jnp.allclose(o1b, ref1, atol=1e-5, rtol=1e-5)

    print("KERNEL_OK")
</pallas_src>

<mosaic_0001>
module attributes {stable_mosaic.version = 11 : i64} {
  func.func @quantum_block_kernel(%arg0: memref<3x1xf32, #tpu.memory_space<vmem>>, %arg1: memref<3x1xf32, #tpu.memory_space<vmem>>, %arg2: memref<3x1xf32, #tpu.memory_space<vmem>>, %arg3: memref<3x1xf32, #tpu.memory_space<vmem>>, %arg4: memref<3x128xf32, #tpu.memory_space<vmem>>, %arg5: memref<3x128xf32, #tpu.memory_space<vmem>>, %arg6: memref<3x128xf32, #tpu.memory_space<vmem>>, %arg7: memref<3x128xf32, #tpu.memory_space<vmem>>) attributes {dimension_semantics = [], scalar_prefetch = 0 : i64, scratch_operands = 0 : i64, tpu.core_type = #tpu.core_type<tc>} {
    %c0 = arith.constant 0 : index
    %c0_0 = arith.constant 0 : index
    %0 = vector.load %arg4[%c0, %c0_0] : memref<3x128xf32, #tpu.memory_space<vmem>>, vector<3x128xf32>
    %c0_1 = arith.constant 0 : index
    %c0_2 = arith.constant 0 : index
    %1 = vector.load %arg5[%c0_1, %c0_2] : memref<3x128xf32, #tpu.memory_space<vmem>>, vector<3x128xf32>
    %c0_3 = arith.constant 0 : index
    %c0_4 = arith.constant 0 : index
    %2 = vector.load %arg0[%c0_3, %c0_4] : memref<3x1xf32, #tpu.memory_space<vmem>>, vector<3x1xf32>
    %3 = vector.broadcast %2 : vector<3x1xf32> to vector<3x128xf32>
    %4 = arith.mulf %3, %0 : vector<3x128xf32>
    %c0_5 = arith.constant 0 : index
    %c0_6 = arith.constant 0 : index
    %5 = vector.load %arg1[%c0_5, %c0_6] : memref<3x1xf32, #tpu.memory_space<vmem>>, vector<3x1xf32>
    %6 = vector.broadcast %5 : vector<3x1xf32> to vector<3x128xf32>
    %7 = arith.mulf %6, %1 : vector<3x128xf32>
    %8 = arith.subf %4, %7 : vector<3x128xf32>
    %c0_7 = arith.constant 0 : index
    %c0_8 = arith.constant 0 : index
    %9 = vector.load %arg6[%c0_7, %c0_8] : memref<3x128xf32, #tpu.memory_space<vmem>>, vector<3x128xf32>
    tpu.vector_store %arg6[%c0_7, %c0_8], %8 {strides = array<i32>} : memref<3x128xf32, #tpu.memory_space<vmem>>, vector<3x128xf32>,
    %c0_9 = arith.constant 0 : index
    %c0_10 = arith.constant 0 : index
    %10 = vector.load %arg2[%c0_9, %c0_10] : memref<3x1xf32, #tpu.memory_space<vmem>>, vector<3x1xf32>
    %11 = vector.broadcast %10 : vector<3x1xf32> to vector<3x128xf32>
    %12 = arith.mulf %11, %1 : vector<3x128xf32>
    %c0_11 = arith.constant 0 : index
    %c0_12 = arith.constant 0 : index
    %13 = vector.load %arg3[%c0_11, %c0_12] : memref<3x1xf32, #tpu.memory_space<vmem>>, vector<3x1xf32>
    %14 = vector.broadcast %13 : vector<3x1xf32> to vector<3x128xf32>
    %15 = arith.mulf %14, %0 : vector<3x128xf32>
    %16 = arith.addf %12, %15 : vector<3x128xf32>
    %c0_13 = arith.constant 0 : index
    %c0_14 = arith.constant 0 : index
    %17 = vector.load %arg7[%c0_13, %c0_14] : memref<3x128xf32, #tpu.memory_space<vmem>>, vector<3x128xf32>
    tpu.vector_store %arg7[%c0_13, %c0_14], %16 {strides = array<i32>} : memref<3x128xf32, #tpu.memory_space<vmem>>, vector<3x128xf32>,
    return
  }
}

</mosaic_0001>

<llo_original>
// kernel: tpu_custom_call.1
$region0: #{tpu_custom_call.1}
  #allocation0 [shape = 'u32[]', space=smem, size = 0x4, offset = 0x4, fixed_abs, tag = 'smem constant byte address 0x4 - core index']
  #allocation1 [shape = 'u32[72,128]{1,0:T(1,128)}', space=vmem, size = 0x9000, scoped, tag = 'internal scratch']
  %s0 = inlined_call_operand.vmem [shape: f32[3,1], index: 0, kind: input, shape index: {}]
  %s1 = inlined_call_operand.vmem [shape: f32[3,1], index: 1, kind: input, shape index: {}]
  %s2 = inlined_call_operand.vmem [shape: f32[3,1], index: 2, kind: input, shape index: {}]
  %s3 = inlined_call_operand.vmem [shape: f32[3,1], index: 3, kind: input, shape index: {}]
  %s4 = inlined_call_operand.vmem [shape: f32[3,128], index: 4, kind: input, shape index: {}]
  %s5 = inlined_call_operand.vmem [shape: f32[3,128], index: 5, kind: input, shape index: {}]
  %s6 = inlined_call_operand.hbm [shape: f32[3,128], index: 6, kind: output, shape index: {0}]
  %s7 = inlined_call_operand.hbm [shape: f32[3,128], index: 7, kind: output, shape index: {1}]
  %8 = xla_tuple %s6, %s7
  %s9 = sld [smem:[#allocation0]]
  $region42: #{tpu_custom_call.1} parent=0
    _
  %s11 = ssub.s32 1, %s9
  %s12 = scalar_select 0, %s11, %s9
  $region1: #{tpu_custom_call.1} parent=0
    #allocation2 [shape = 'u8[2048]{0}', space=vmem, size = 0x800, scoped, tag = 'output window, operand 0, single buffered']
    #allocation3 [shape = 's32[1]{0}', space=sflag, size = 0x4, scoped, tag = 'scoped memory for tpu_custom_call.1']
    #allocation4 [shape = 'u8[2048]{0}', space=vmem, size = 0x800, scoped, tag = 'output window, operand 1, single buffered']
    #allocation5 [shape = 's32[1]{0}', space=sflag, size = 0x4, scoped, tag = 'scoped memory for tpu_custom_call.1']
    %13 = vsyncpa [#allocation3], 0
    %14 = vsyncpa [#allocation5], 0
    // Predicated region
    $region2: #{tpu_custom_call.1} parent=1 // pred_check
      _
    $region3: #{tpu_custom_call.1} parent=1 // pred_check_branch
      %16 = sbr.rel (0) target = $region5
    $region4: #{tpu_custom_call.1} parent=1 // pred_region
      _
    $region5: #{tpu_custom_call.1} parent=1 // pred_fallthru
      _
    // Predicated region
    $region6: #{tpu_custom_call.1} parent=1 // pred_check
      _
    $region7: #{tpu_custom_call.1} parent=1 // pred_check_branch
      %18 = sbr.rel (0) target = $region9
    $region8: #{tpu_custom_call.1} parent=1 // pred_region
      _
    $region9: #{tpu_custom_call.1} parent=1 // pred_fallthru
      _
    // Predicated region
    $region10: #{tpu_custom_call.1} parent=1 // pred_check
      _
    $region11: #{tpu_custom_call.1} parent=1 // pred_check_branch
      %20 = sbr.rel (0) target = $region13
    $region12: #{tpu_custom_call.1} parent=1 // pred_region
      _
    $region13: #{tpu_custom_call.1} parent=1 // pred_fallthru
      _
    // Predicated region
    $region14: #{tpu_custom_call.1} parent=1 // pred_check
      _
    $region15: #{tpu_custom_call.1} parent=1 // pred_check_branch
      %22 = sbr.rel (0) target = $region17
    $region16: #{tpu_custom_call.1} parent=1 // pred_region
      _
    $region17: #{tpu_custom_call.1} parent=1 // pred_fallthru
      _
    // Predicated region
    $region18: #{tpu_custom_call.1} parent=1 // pred_check
      _
    $region19: #{tpu_custom_call.1} parent=1 // pred_check_branch
      %24 = sbr.rel (0) target = $region21
    $region20: #{tpu_custom_call.1} parent=1 // pred_region
      _
    $region21: #{tpu_custom_call.1} parent=1 // pred_fallthru
      _
    // Predicated region
    $region22: #{tpu_custom_call.1} parent=1 // pred_check
      _
    $region23: #{tpu_custom_call.1} parent=1 // pred_check_branch
      %26 = sbr.rel (0) target = $region25
    $region24: #{tpu_custom_call.1} parent=1 // pred_region
      _
    $region25: #{tpu_custom_call.1} parent=1 // pred_fallthru
      _
    %v27 = vld [vmem:[%s4] sm:$0x7]
    %v28 = vld [vmem:[%s5] sm:$0x7]
    %v29 = vld [vmem:[%s0] sm:$0x7]
    %31 = vset.pattern.permute.xlu0 0
    %32 = vperm.xlu0 %31, %v29
    %v33 = vpop.permute.xlu0 %32
    %v35 = vmul.f32 %v33, %v27
    %v36 = vld [vmem:[%s1] sm:$0x7]
    %38 = vset.pattern.permute.xlu0 0
    %39 = vperm.xlu0 %38, %v36
    %v40 = vpop.permute.xlu0 %39
    %v42 = vmul.f32 %v40, %v28
    %v43 = vsub.f32 %v35, %v42
    %44 = vst [vmem:[#allocation2] sm:$0x7] %v43
    %v45 = vld [vmem:[%s2] sm:$0x7]
    %47 = vset.pattern.permute.xlu0 0
    %48 = vperm.xlu0 %47, %v45
    %v49 = vpop.permute.xlu0 %48
    %v51 = vmul.f32 %v49, %v28
    %v52 = vld [vmem:[%s3] sm:$0x7]
    %54 = vset.pattern.permute.xlu0 0
    %55 = vperm.xlu0 %54, %v52
    %v56 = vpop.permute.xlu0 %55
    %v58 = vmul.f32 %v56, %v27
    %v59 = vadd.f32 %v51, %v58
    %60 = vst [vmem:[#allocation4] sm:$0x7] %v59
    // Predicated region
    $region26: #{tpu_custom_call.1} parent=1 // pred_check
      _
    $region27: #{tpu_custom_call.1} parent=1 // pred_check_branch
      %62 = sbr.rel (0) target = $region29
    $region28: #{tpu_custom_call.1} parent=1 // pred_region
      %64 = vsyncadd [#allocation3], 0
      %s66 = sshll.u32 [#allocation2], 4
      %s67 = int_to_ptr.vmem [resolvable:$true] %s66
      %s68 = sshll.u32 %s6, 4
      %s69 = int_to_ptr.hbm [resolvable:$true] %s68
      %71 = dma.vmem_to_hbm [thread:$0]  %s67, 64, %s69, [#allocation3]
    $region29: #{tpu_custom_call.1} parent=1 // pred_fallthru
      _
    // Predicated region
    $region30: #{tpu_custom_call.1} parent=1 // pred_check
      _
    $region31: #{tpu_custom_call.1} parent=1 // pred_check_branch
      %73 = sbr.rel (0) target = $region33
    $region32: #{tpu_custom_call.1} parent=1 // pred_region
      %75 = vsyncadd [#allocation5], 0
      %s77 = sshll.u32 [#allocation4], 4
      %s78 = int_to_ptr.vmem [resolvable:$true] %s77
      %s79 = sshll.u32 %s7, 4
      %s80 = int_to_ptr.hbm [resolvable:$true] %s79
      %82 = dma.vmem_to_hbm [thread:$0]  %s78, 64, %s80, [#allocation5]
    $region33: #{tpu_custom_call.1} parent=1 // pred_fallthru
      _
    // Predicated region
    $region34: #{tpu_custom_call.1} parent=1 // pred_check
      _
    $region35: #{tpu_custom_call.1} parent=1 // pred_check_branch
      %84 = sbr.rel (0) target = $region37
    $region36: #{tpu_custom_call.1} parent=1 // pred_region
      %86 = dma.done [#allocation3], 64
    $region37: #{tpu_custom_call.1} parent=1 // pred_fallthru
      _
    // Predicated region
    $region38: #{tpu_custom_call.1} parent=1 // pred_check
      _
    $region39: #{tpu_custom_call.1} parent=1 // pred_check_branch
      %88 = sbr.rel (0) target = $region41
    $region40: #{tpu_custom_call.1} parent=1 // pred_region
      %90 = dma.done [#allocation5], 64
    $region41: #{tpu_custom_call.1} parent=1 // pred_fallthru
      _
    %91 = vsyncpa [#allocation3], 1
    %92 = vsyncpa [#allocation5], 1

</llo_original>
